<compile_context>
chip_gen: v7x
topology: tpu7x:2x2x1
jax: 0.10.0
libtpu: 0.0.40
codegen_flags: <defaults>
</compile_context>

<pallas_src>
import jax
import jax.numpy as jnp
from jax.experimental import pallas as pl
from jax.experimental.pallas import tpu as pltpu


# ---------------------------------------------------------------------------
# Pallas kernels: z = scale * x + shift   (per-channel affine, pure VPU)
# ---------------------------------------------------------------------------
def _actnorm_affine_kernel(scale_ref, shift_ref, x_ref, z_ref):
    # scale_ref/shift_ref: (1, C, 1), same block every grid step (broadcast).
    # x_ref/z_ref:         (1, C, TT) activation tiles (TT multiple of 128 or = t).
    # Native-dtype math (bf16-native on v6e/v7x, f32 for f32 inputs).
    z_ref[...] = x_ref[...] * scale_ref[...] + shift_ref[...]


def _actnorm_affine_mask_kernel(scale_ref, shift_ref, x_ref, mask_ref, z_ref):
    # mask_ref: (1, 1, TT) — fused mask multiply (one extra VPU mul per vreg).
    z_ref[...] = (x_ref[...] * scale_ref[...] + shift_ref[...]) * mask_ref[...]


def _choose_t_tile(c, t, itemsize, target_bytes):
    """Lane-dense tile over t: multiple of 128, ~target_bytes for the x block.
    Returns the full t when a single block already fits (no partial blocks)."""
    tt = ((target_bytes // max(1, c * itemsize)) // 128) * 128
    tt = max(128, tt)
    if tt >= t:
        return t          # full-extent last dim: always a legal block shape
    return tt


def actnorm_affine(scale, shift, x, x_mask=None, *,
                   target_block_bytes=4 << 20,
                   vmem_limit_bytes=32 << 20,
                   donate_x=False):
    """z[b, c, t] = (scale[c] * x[b, c, t] + shift[c]) * (mask or 1)."""
    b, c, t = x.shape
    dt = x.dtype
    itemsize = jnp.dtype(dt).itemsize

    tt = _choose_t_tile(c, t, itemsize, target_block_bytes)
    n_t = pl.cdiv(t, tt)          # no padding: partial last block handled by Pallas
    grid = (n_t, b)               # t-tiles lead -> megacore split works at b=1

    scale3 = scale.reshape(1, c, 1).astype(dt)
    shift3 = shift.reshape(1, c, 1).astype(dt)

    in_specs = [
        pl.BlockSpec((1, c, 1), lambda ti, bi: (0, 0, 0)),
        pl.BlockSpec((1, c, 1), lambda ti, bi: (0, 0, 0)),
        pl.BlockSpec((1, c, tt), lambda ti, bi: (bi, 0, ti)),
    ]
    args = [scale3, shift3, x]
    kernel = _actnorm_affine_kernel
    bytes_accessed = 2 * b * c * t * itemsize
    flops = 2 * b * c * t

    if x_mask is not None:
        in_specs.append(pl.BlockSpec((1, 1, tt), lambda ti, bi: (bi, 0, ti)))
        args.append(x_mask.astype(dt))
        kernel = _actnorm_affine_mask_kernel
        bytes_accessed += b * t * itemsize
        flops += b * c * t

    io_alias = {2: 0} if donate_x else {}

    return pl.pallas_call(
        kernel,
        out_shape=jax.ShapeDtypeStruct((b, c, t), dt),
        grid_spec=pltpu.PrefetchScalarGridSpec(
            num_scalar_prefetch=0,
            grid=grid,
            in_specs=in_specs,
            out_specs=pl.BlockSpec((1, c, tt), lambda ti, bi: (bi, 0, ti)),
        ),
        compiler_params=pltpu.CompilerParams(
            dimension_semantics=("parallel", "parallel"),
            vmem_limit_bytes=vmem_limit_bytes,
        ),
        cost_estimate=pl.CostEstimate(
            flops=flops,
            transcendentals=0,
            bytes_accessed=bytes_accessed,
        ),
        input_output_aliases=io_alias,
    )(*args)


# ---------------------------------------------------------------------------
# Forward pass (mirrors ActNorm.forward, initialized=True path)
# ---------------------------------------------------------------------------
def actnorm_forward(logs, bias, x, x_mask=None, reverse=False, donate_x=False):
    b, c, t = x.shape
    logs_f32 = logs.reshape(c).astype(jnp.float32)
    bias_f32 = bias.reshape(c).astype(jnp.float32)

    if reverse:
        # z = (x - bias) * exp(-logs)  ==  x * exp(-logs) + (-bias * exp(-logs))
        scale = jnp.exp(-logs_f32)
        shift = -bias_f32 * scale
        log_scale_sum = jnp.sum(-logs_f32)
    else:
        # z = bias + exp(logs) * x
        scale = jnp.exp(logs_f32)
        shift = bias_f32
        log_scale_sum = jnp.sum(logs_f32)

    # Mask (if any) is fused into the Pallas kernel — no extra HBM round trip.
    z = actnorm_affine(scale, shift, x, x_mask, donate_x=donate_x)

    if x_mask is None:
        # Default mask is ones(b, 1, t) -> masking is a no-op, x_len = t.
        x_len = jnp.full((b,), t, dtype=jnp.float32)
    else:
        x_len = jnp.sum(x_mask, axis=(1, 2)).astype(jnp.float32)

    logdet = log_scale_sum * x_len   # computed in f32 regardless of x dtype
    return z, logdet


# ---------------------------------------------------------------------------
# Data-dependent init (ddi=True path). Cold path, run once -> plain JAX.
# ---------------------------------------------------------------------------
def actnorm_initialize(x, x_mask=None):
    b, c, t = x.shape
    if x_mask is None:
        x_mask = jnp.ones((b, 1, t), dtype=x.dtype)
    denom = jnp.sum(x_mask, axis=(0, 2))
    m = jnp.sum(x * x_mask, axis=(0, 2)) / denom
    m_sq = jnp.sum(x * x * x_mask, axis=(0, 2)) / denom
    v = m_sq - m ** 2
    logs = 0.5 * jnp.log(jnp.clip(v, 1e-6, None))
    bias_init = (-m * jnp.exp(-logs)).reshape(1, c, 1)
    logs_init = (-logs).reshape(1, c, 1)
    return logs_init, bias_init


# ---------------------------------------------------------------------------
if __name__ == "__main__":
    b, c, t = 2, 8, 200          # ragged t exercises the partial-last-block path

    key = jax.random.PRNGKey(0)
    k_x, k_logs, k_bias, k_len = jax.random.split(key, 4)

    x = jax.random.normal(k_x, (b, c, t), dtype=jnp.float32)
    logs = 0.1 * jax.random.normal(k_logs, (1, c, 1), dtype=jnp.float32)
    bias = jax.random.normal(k_bias, (1, c, 1), dtype=jnp.float32)

    # -------- unmasked forward --------
    z, logdet = actnorm_forward(logs, bias, x)
    z = jax.block_until_ready(z)
    logdet = jax.block_until_ready(logdet)

    z_ref = bias + jnp.exp(logs) * x
    logdet_ref = jnp.sum(logs) * jnp.full((b,), t, dtype=jnp.float32)
    assert z.shape == (b, c, t) and logdet.shape == (b,)
    assert jnp.allclose(z, z_ref, atol=1e-5, rtol=1e-5)
    assert jnp.allclose(logdet, logdet_ref, atol=1e-5, rtol=1e-5)

    # -------- reverse round-trips through the same kernel --------
    x_rec, logdet_rev = actnorm_forward(logs, bias, z, reverse=True)
    x_rec = jax.block_until_ready(x_rec)
    assert jnp.allclose(x_rec, x, atol=1e-5, rtol=1e-5)
    assert jnp.allclose(logdet + logdet_rev, jnp.zeros((b,)), atol=1e-5)

    # -------- masked forward (mask fused into the kernel) --------
    lengths = jnp.array([150, 200], dtype=jnp.int32)
    x_mask = (jnp.arange(t)[None, None, :] < lengths[:, None, None]).astype(jnp.float32)

    z_m, logdet_m = actnorm_forward(logs, bias, x, x_mask)
    z_m = jax.block_until_ready(z_m)
    logdet_m = jax.block_until_ready(logdet_m)

    z_m_ref = (bias + jnp.exp(logs) * x) * x_mask
    logdet_m_ref = jnp.sum(logs) * jnp.sum(x_mask, axis=(1, 2))
    assert jnp.allclose(z_m, z_m_ref, atol=1e-5, rtol=1e-5)
    assert jnp.allclose(logdet_m, logdet_m_ref, atol=1e-5, rtol=1e-5)

    print("KERNEL_OK")
</pallas_src>

<mosaic_0001>
module attributes {stable_mosaic.version = 11 : i64} {
  func.func @_actnorm_affine_kernel(%arg0: i32, %arg1: i32, %arg2: memref<1x8x1xf32, #tpu.memory_space<vmem>>, %arg3: memref<1x8x1xf32, #tpu.memory_space<vmem>>, %arg4: memref<1x8x200xf32, #tpu.memory_space<vmem>>, %arg5: memref<1x8x200xf32, #tpu.memory_space<vmem>>) attributes {dimension_semantics = [#tpu.dimension_semantics<parallel>, #tpu.dimension_semantics<parallel>], iteration_bounds = array<i64: 1, 2>, scalar_prefetch = 0 : i64, scratch_operands = 0 : i64, tpu.core_type = #tpu.core_type<tc>, window_params = [{pipeline_mode = #tpu.pipeline_mode<synchronous>, transform_indices = @transform_0, window_bounds = array<i64: 1, 8, 1>}, {pipeline_mode = #tpu.pipeline_mode<synchronous>, transform_indices = @transform_1, window_bounds = array<i64: 1, 8, 1>}, {transform_indices = @transform_2, window_bounds = array<i64: 1, 8, 200>}, {transform_indices = @transform_3, window_bounds = array<i64: 1, 8, 200>}]} {
    %c0 = arith.constant 0 : index
    %c0_0 = arith.constant 0 : index
    %c0_1 = arith.constant 0 : index
    %0 = vector.load %arg4[%c0, %c0_0, %c0_1] : memref<1x8x200xf32, #tpu.memory_space<vmem>>, vector<1x8x200xf32>
    %c0_2 = arith.constant 0 : index
    %c0_3 = arith.constant 0 : index
    %c0_4 = arith.constant 0 : index
    %1 = vector.load %arg2[%c0_2, %c0_3, %c0_4] : memref<1x8x1xf32, #tpu.memory_space<vmem>>, vector<1x8x1xf32>
    %2 = vector.broadcast %1 : vector<1x8x1xf32> to vector<1x8x200xf32>
    %3 = arith.mulf %0, %2 : vector<1x8x200xf32>
    %c0_5 = arith.constant 0 : index
    %c0_6 = arith.constant 0 : index
    %c0_7 = arith.constant 0 : index
    %4 = vector.load %arg3[%c0_5, %c0_6, %c0_7] : memref<1x8x1xf32, #tpu.memory_space<vmem>>, vector<1x8x1xf32>
    %5 = vector.broadcast %4 : vector<1x8x1xf32> to vector<1x8x200xf32>
    %6 = arith.addf %3, %5 : vector<1x8x200xf32>
    %c0_8 = arith.constant 0 : index
    %c0_9 = arith.constant 0 : index
    %c0_10 = arith.constant 0 : index
    %7 = vector.load %arg5[%c0_8, %c0_9, %c0_10] : memref<1x8x200xf32, #tpu.memory_space<vmem>>, vector<1x8x200xf32>
    tpu.vector_store %arg5[%c0_8, %c0_9, %c0_10], %6 {strides = array<i32>} : memref<1x8x200xf32, #tpu.memory_space<vmem>>, vector<1x8x200xf32>,
    return
  }
  func.func @transform_0(%arg0: i32, %arg1: i32) -> (i32, i32, i32) {
    %c0_i32 = arith.constant 0 : i32
    %c0_i32_0 = arith.constant 0 : i32
    %c0_i32_1 = arith.constant 0 : i32
    %c0_i32_2 = arith.constant 0 : i32
    return %c0_i32, %c0_i32_0, %c0_i32_1 : i32, i32, i32
  }
  func.func @transform_1(%arg0: i32, %arg1: i32) -> (i32, i32, i32) {
    %c0_i32 = arith.constant 0 : i32
    %c0_i32_0 = arith.constant 0 : i32
    %c0_i32_1 = arith.constant 0 : i32
    %c0_i32_2 = arith.constant 0 : i32
    return %c0_i32, %c0_i32_0, %c0_i32_1 : i32, i32, i32
  }
  func.func @transform_2(%arg0: i32, %arg1: i32) -> (i32, i32, i32) {
    %c0_i32 = arith.constant 0 : i32
    %c0_i32_0 = arith.constant 0 : i32
    return %arg1, %c0_i32, %arg0 : i32, i32, i32
  }
  func.func @transform_3(%arg0: i32, %arg1: i32) -> (i32, i32, i32) {
    %c0_i32 = arith.constant 0 : i32
    %c0_i32_0 = arith.constant 0 : i32
    return %arg1, %c0_i32, %arg0 : i32, i32, i32
  }
}

</mosaic_0001>

<llo_original>
// kernel: tpu_custom_call.1
$region0: #{tpu_custom_call.1}
  #allocation0 [shape = 'u32[]', space=smem, size = 0x4, offset = 0x4, fixed_abs, tag = 'smem constant byte address 0x4 - core index']
  #allocation1 [shape = 'u32[144,128]{1,0:T(1,128)}', space=vmem, size = 0x12000, scoped, tag = 'internal scratch']
  %s0 = inlined_call_operand.vmem [shape: f32[1,8,1], index: 0, kind: input, shape index: {}]
  %s1 = inlined_call_operand.vmem [shape: f32[1,8,1], index: 1, kind: input, shape index: {}]
  %s2 = inlined_call_operand.hbm [shape: f32[2,8,200], index: 2, kind: input, shape index: {}]
  %s3 = inlined_call_operand.hbm [shape: f32[2,8,200], index: 3, kind: output, shape index: {}]
  %s4 = sld [smem:[#allocation0]]
  $region49: #{tpu_custom_call.1} parent=0
    _
  %s6 = ssub.s32 1, %s4
  %s7 = scalar_select 0, %s6, %s4
  $region1: #{tpu_custom_call.1} parent=0
    #allocation2 [shape = 'u8[16384]{0}', space=vmem, size = 0x4000, scoped, tag = 'input window, operand 2']
    #allocation3 [shape = 's32[2]{0}', space=sflag, size = 0x8, scoped, tag = 'scoped memory for tpu_custom_call.1']
    #allocation4 [shape = 's32[2]{0}', space=sflag, size = 0x8, scoped, tag = 'scoped memory for tpu_custom_call.1']
    #allocation5 [shape = 'u8[16384]{0}', space=vmem, size = 0x4000, scoped, tag = 'output window, operand 0']
    %8 = vsyncpa [#allocation3], 0
    %s9 = scalar_lea.sflag [#allocation3], 1
    %10 = vsyncpa %s9, 0
    %11 = vsyncpa [#allocation4], 0
    %s12 = scalar_lea.sflag [#allocation4], 1
    %13 = vsyncpa %s12, 0
    loop: start=0, step=1, limit=4
    $region2: #{tpu_custom_call.1} parent=1 // loop_pre_header
      _
    $region3: #{tpu_custom_call.1} parent=1 // loop_header
      %s15 = sphi 0, %s19
      %p16 = scmp.ge.s32.totalorder %s15, 4
      %s22 = sphi 0, %s34
      %s23 = sphi 0, %s30
      %s24 = sphi 0, %s22
      %s25 = sphi 0, %s23
      %s26 = sphi 0, %s24
      %s27 = sphi 0, %s25
      %s35 = sphi 0, %s35
      %s37 = sphi 0, %s35
      %s38 = sphi 0, %s37
      %s52 = sphi 0, %s38
      %s56 = sphi 0, %s56
      %s58 = sphi 0, %s56
      %s59 = sphi 0, %s58
      %s73 = sphi 0, %s59
      %s81 = sphi 0, %s83
      %s84 = sphi 0, %s81
      %s85 = sphi 0, %s84
      %s101 = sphi 0, %s85
      %s109 = sphi 0, %s111
      %s112 = sphi 0, %s109
      %s113 = sphi 0, %s112
      %s129 = sphi 0, %s113
    $region4: #{tpu_custom_call.1} parent=1 // loop_header_branch
      %18 = sbr.rel (%p16) target = $region8
    $region5: #{tpu_custom_call.1} parent=1 // loop_body
      %s20 = ssub.s32 %s15, 1
      %s21 = ssub.s32 %s15, 2
      %s28 = sadd.s32 1, %s23
      %p29 = scmp.ge.s32.totalorder %s28, 2
      %s30 = scalar_select %p29, 0, %s28
      %s31 = sadd.s32 1, %s22
      %s32 = scalar_select %p29, %s31, %s22
      %p33 = scmp.ge.s32.totalorder %s32, 1
      %s34 = scalar_select %p33, 0, %s32
      %s36 = sadd.s32 %s35, 1
      %p39 = scmp.eq.s32.totalorder %s15, 1
      %p40 = scmp.ne.s32.totalorder %s35, %s37
      %p41 = scmp.eq.s32.totalorder %s15, 0
      %p42 = por %p40, %p41
      %p43 = scmp.ne.s32.totalorder %s35, %s37
      %p44 = scmp.eq.s32.totalorder %s20, 1
      %p45 = por %p43, %p44
      %p46 = scmp.ne.s32.totalorder %s37, %s38
      %p47 = scmp.eq.s32.totalorder %s20, 0
      %p48 = por %p46, %p47
      %p49 = scmp.ne.s32.totalorder %s37, %s38
      %p50 = scmp.eq.s32.totalorder %s21, 1
      %p51 = por %p49, %p50
      %p53 = scmp.ne.s32.totalorder %s38, %s52
      %p54 = scmp.eq.s32.totalorder %s21, 0
      %p55 = por %p53, %p54
      %s57 = sadd.s32 %s56, 1
      %p60 = scmp.eq.s32.totalorder %s15, 1
      %p61 = scmp.ne.s32.totalorder %s56, %s58
      %p62 = scmp.eq.s32.totalorder %s15, 0
      %p63 = por %p61, %p62
      %p64 = scmp.ne.s32.totalorder %s56, %s58
      %p65 = scmp.eq.s32.totalorder %s20, 1
      %p66 = por %p64, %p65
      %p67 = scmp.ne.s32.totalorder %s58, %s59
      %p68 = scmp.eq.s32.totalorder %s20, 0
      %p69 = por %p67, %p68
      %p70 = scmp.ne.s32.totalorder %s58, %s59
      %p71 = scmp.eq.s32.totalorder %s21, 1
      %p72 = por %p70, %p71
      %p74 = scmp.ne.s32.totalorder %s59, %s73
      %p75 = scmp.eq.s32.totalorder %s21, 0
      %p76 = por %p74, %p75
      %s77 = ssub.s32 %s23, %s30
      %s78 = ssub.s32 %s22, %s34
      %s79 = sor.u32 %s77, %s78
      %p80 = scmp.eq.s32.totalorder %s79, 0
      %s82 = sadd.s32 %s81, 1
      %s83 = scalar_select %p80, %s81, %s82
      %p86 = pneg %p80
      %p87 = scmp.eq.s32.totalorder %s15, 1
      %p88 = por %p86, %p87
      %p89 = scmp.ne.s32.totalorder %s81, %s84
      %p90 = scmp.eq.s32.totalorder %s15, 0
      %p91 = por %p89, %p90
      %p92 = scmp.ne.s32.totalorder %s81, %s84
      %p93 = scmp.eq.s32.totalorder %s20, 1
      %p94 = por %p92, %p93
      %p95 = scmp.ne.s32.totalorder %s84, %s85
      %p96 = scmp.eq.s32.totalorder %s20, 0
      %p97 = por %p95, %p96
      %p98 = scmp.ne.s32.totalorder %s84, %s85
      %p99 = scmp.eq.s32.totalorder %s21, 1
      %p100 = por %p98, %p99
      %p102 = scmp.ne.s32.totalorder %s85, %s101
      %p103 = scmp.eq.s32.totalorder %s21, 0
      %p104 = por %p102, %p103
      %s105 = ssub.s32 %s23, %s30
      %s106 = ssub.s32 %s22, %s34
      %s107 = sor.u32 %s105, %s106
      %p108 = scmp.eq.s32.totalorder %s107, 0
      %s110 = sadd.s32 %s109, 1
      %s111 = scalar_select %p108, %s109, %s110
      %p114 = pneg %p108
      %p115 = scmp.eq.s32.totalorder %s15, 1
      %p116 = por %p114, %p115
      %p117 = scmp.ne.s32.totalorder %s109, %s112
      %p118 = scmp.eq.s32.totalorder %s15, 0
      %p119 = por %p117, %p118
      %p120 = scmp.ne.s32.totalorder %s109, %s112
      %p121 = scmp.eq.s32.totalorder %s20, 1
      %p122 = por %p120, %p121
      %p123 = scmp.ne.s32.totalorder %s112, %s113
      %p124 = scmp.eq.s32.totalorder %s20, 0
      %p125 = por %p123, %p124
      %p126 = scmp.ne.s32.totalorder %s112, %s113
      %p127 = scmp.eq.s32.totalorder %s21, 1
      %p128 = por %p126, %p127
      %p130 = scmp.ne.s32.totalorder %s113, %s129
      %p131 = scmp.eq.s32.totalorder %s21, 0
      %p132 = por %p130, %p131
      %p133 = scmp.le.s32.totalorder 1, %s15
      %p134 = scmp.lt.s32.totalorder %s15, 3
      %p135 = pnand %p133, %p134
      %p136 = pneg %p135
      // Predicated region
      $region9: #{tpu_custom_call.1} parent=5 // pred_check
        _
      $region10: #{tpu_custom_call.1} parent=5 // pred_check_branch
        %138 = sbr.rel (%p135) target = $region12
      $region11: #{tpu_custom_call.1} parent=5 // pred_region
        %s139 = ssub.s32 %s15, 1
        // Predicated region
        $region13: #{tpu_custom_call.1} parent=11 // pred_check
          %p140 = pneg %p48
        $region14: #{tpu_custom_call.1} parent=11 // pred_check_branch
          %142 = sbr.rel (%p140) target = $region16
        $region15: #{tpu_custom_call.1} parent=11 // pred_region
          _
        $region16: #{tpu_custom_call.1} parent=11 // pred_fallthru
          _
        // Predicated region
        $region17: #{tpu_custom_call.1} parent=11 // pred_check
          %p143 = pneg %p69
        $region18: #{tpu_custom_call.1} parent=11 // pred_check_branch
          %145 = sbr.rel (%p143) target = $region20
        $region19: #{tpu_custom_call.1} parent=11 // pred_region
          _
        $region20: #{tpu_custom_call.1} parent=11 // pred_fallthru
          _
      $region12: #{tpu_custom_call.1} parent=5 // pred_fallthru
        _
      %p146 = scmp.lt.s32.totalorder %s15, 2
      // Predicated region
      $region21: #{tpu_custom_call.1} parent=5 // pred_check
        %p147 = pneg %p146
      $region22: #{tpu_custom_call.1} parent=5 // pred_check_branch
        %149 = sbr.rel (%p147) target = $region24
      $region23: #{tpu_custom_call.1} parent=5 // pred_region
        // Predicated region
        $region25: #{tpu_custom_call.1} parent=23 // pred_check
          %p150 = pneg %p91
        $region26: #{tpu_custom_call.1} parent=23 // pred_check_branch
          %152 = sbr.rel (%p150) target = $region28
        $region27: #{tpu_custom_call.1} parent=23 // pred_region
          %s153 = sand.u32 %s81, 1
          %s154 = scalar_lea.sflag [#allocation3], %s153
          %s155 = sand.u32 %s81, 1
          %s156 = smul.addr %s155, 16
          %s157 = scalar_lea.vmem [#allocation2], %s156
          %s158 = smul.u32 2, %s22
          %s160 = ssub.s32 256, 256
          %161 = vsyncadd %s154, %s160
          %s162 = smul.addr %s23, 2
          %s163 = sadd.s32 %s158, %s162
          %s164 = smul.addr %s163, 128
          %s165 = scalar_lea.hbm %s2, %s164
          %s167 = sshll.u32 %s157, 4
          %s168 = int_to_ptr.vmem [resolvable:$true] %s167
          %170 = dma.hbm_to_vmem [thread:$0]  %s165, 256, %s168, %s154
        $region28: #{tpu_custom_call.1} parent=23 // pred_fallthru
          _
      $region24: #{tpu_custom_call.1} parent=5 // pred_fallthru
        _
      %p171 = scmp.le.s32.totalorder 1, %s15
      %p172 = scmp.lt.s32.totalorder %s15, 3
      %p173 = pnand %p171, %p172
      %p174 = pneg %p173
      // Predicated region
      $region29: #{tpu_custom_call.1} parent=5 // pred_check
        _
      $region30: #{tpu_custom_call.1} parent=5 // pred_check_branch
        %176 = sbr.rel (%p173) target = $region32
      $region31: #{tpu_custom_call.1} parent=5 // pred_region
        %s177 = ssub.s32 %s15, 1
        %s178 = sand.u32 %s84, 1
        %s179 = scalar_lea.sflag [#allocation3], %s178
        %s180 = sand.u32 %s84, 1
        %s181 = smul.addr %s180, 16
        %s182 = scalar_lea.vmem [#allocation2], %s181
        // Predicated region
        $region33: #{tpu_custom_call.1} parent=31 // pred_check
          %p183 = pneg %p97
        $region34: #{tpu_custom_call.1} parent=31 // pred_check_branch
          %185 = sbr.rel (%p183) target = $region36
        $region35: #{tpu_custom_call.1} parent=31 // pred_region
          %186 = dma.done %s179, 256
        $region36: #{tpu_custom_call.1} parent=31 // pred_fallthru
          _
        %p187 = pneg %p48
        %p188 = pneg %p45
        %p189 = pneg %p69
        %p190 = pneg %p66
        %s191 = sand.u32 %s84, 1
        %s192 = scalar_lea.sflag [#allocation3], %s191
        %s193 = sand.u32 %s84, 1
        %s194 = smul.addr %s193, 16
        %s195 = scalar_lea.vmem [#allocation2], %s194
        %p196 = pneg %p97
        %p197 = pneg %p94
        %p198 = pneg %p125
        %p199 = pneg %p122
        %s200 = sand.u32 %s112, 1
        %s201 = scalar_lea.sflag [#allocation4], %s200
        %s202 = sand.u32 %s112, 1
        %s203 = smul.addr %s202, 16
        %s204 = scalar_lea.vmem [#allocation5], %s203
        %s205 = smul.u32 2, %s24
        %s206 = smul.u32 2, %s24
        %v207 = vld [vmem:[%s182] sm:$0xff]
        %v208 = vld [vmem:[%s182 + $0x8] sm:$0xff]
        %v209 = vld [vmem:[%s0] sm:$0xff]
        %211 = vset.pattern.permute.xlu0 0
        %212 = vperm.xlu0 %211, %v209
        %v213 = vpop.permute.xlu0 %212
        %v215 = vmul.f32 %v207, %v213
        %v216 = vmul.f32 %v208, %v213
        %v217 = vld [vmem:[%s1] sm:$0xff]
        %219 = vset.pattern.permute.xlu0 0
        %220 = vperm.xlu0 %219, %v217
        %v221 = vpop.permute.xlu0 %220
        %v223 = vadd.f32 %v215, %v221
        %v224 = vadd.f32 %v216, %v221
        %225 = vst [vmem:[%s204] sm:$0xff] %v223
        %vm226 = vcmask 588800
        %227 = vst.msk [vmem:[%s204 + $0x8] sm:$0xff] %vm226, %v224
        %s228 = sand.u32 %s112, 1
        %s229 = scalar_lea.sflag [#allocation4], %s228
        %s230 = sand.u32 %s112, 1
        %s231 = smul.addr %s230, 16
        %s232 = scalar_lea.vmem [#allocation5], %s231
        // Predicated region
        $region37: #{tpu_custom_call.1} parent=31 // pred_check
          %p233 = pneg %p122
        $region38: #{tpu_custom_call.1} parent=31 // pred_check_branch
          %235 = sbr.rel (%p233) target = $region40
        $region39: #{tpu_custom_call.1} parent=31 // pred_region
          %s236 = smul.u32 2, %s24
          %s238 = ssub.s32 256, 256
          %239 = vsyncadd %s229, %s238
          %s240 = smul.addr %s25, 2
          %s241 = sadd.s32 %s236, %s240
          %s242 = smul.addr %s241, 128
          %s243 = scalar_lea.hbm %s3, %s242
          %s245 = sshll.u32 %s232, 4
          %s246 = int_to_ptr.vmem [resolvable:$true] %s245
          %248 = dma.vmem_to_hbm [thread:$0]  %s246, 256, %s243, %s229
        $region40: #{tpu_custom_call.1} parent=31 // pred_fallthru
          _
      $region32: #{tpu_custom_call.1} parent=5 // pred_fallthru
        _
      %p249 = scmp.le.s32.totalorder 2, %s15
      // Predicated region
      $region41: #{tpu_custom_call.1} parent=5 // pred_check
        %p250 = pneg %p249
      $region42: #{tpu_custom_call.1} parent=5 // pred_check_branch
        %252 = sbr.rel (%p250) target = $region44
      $region43: #{tpu_custom_call.1} parent=5 // pred_region
        %s253 = ssub.s32 %s15, 2
        // Predicated region
        $region45: #{tpu_custom_call.1} parent=43 // pred_check
          %p254 = pneg %p128
        $region46: #{tpu_custom_call.1} parent=43 // pred_check_branch
          %256 = sbr.rel (%p254) target = $region48
        $region47: #{tpu_custom_call.1} parent=43 // pred_region
          %s257 = sand.u32 %s113, 1
          %s258 = scalar_lea.sflag [#allocation4], %s257
          %s259 = sand.u32 %s113, 1
          %s260 = smul.addr %s259, 16
          %s261 = scalar_lea.vmem [#allocation5], %s260
          %262 = dma.done %s258, 256
        $region48: #{tpu_custom_call.1} parent=43 // pred_fallthru
          _
      $region44: #{tpu_custom_call.1} parent=5 // pred_fallthru
        _
    $region6: #{tpu_custom_call.1} parent=1 // loop_footer
      %s19 = sadd.s32 1, %s15
    $region7: #{tpu_custom_call.1} parent=1 // loop_footer_branch
      %14 = sbr.rel target = $region3
    $region8: #{tpu_custom_call.1} parent=1 // loop_exit
      _
    %263 = vsyncpa [#allocation3], 1
    %s264 = scalar_lea.sflag [#allocation3], 1
    %265 = vsyncpa %s264, 1
    %266 = vsyncpa [#allocation4], 1
    %s267 = scalar_lea.sflag [#allocation4], 1
    %268 = vsyncpa %s267, 1

</llo_original>
